<compile_context>
chip_gen: v6e
topology: v6e:2x2x1
jax: 0.10.0
libtpu: 0.0.40
codegen_flags: <defaults>
</compile_context>

<pallas_src>
import jax
import jax.numpy as jnp
from jax.experimental import pallas as pl
from jax.experimental.pallas import tpu as pltpu

IN_FEATURES = 512


def _classifier_kernel(x_ref, w_ref, b_ref, o_ref):
    # Fused ReLU -> matmul (MXU, f32 accumulate) -> bias add, all in VMEM.
    x = jnp.maximum(x_ref[...], 0.0)                      # nn.ReLU()
    # Weight is pre-transposed in the wrapper to (F, n_pad): plain dot, native
    # MXU RHS layout (K on sublanes, N on lanes) -> no in-kernel relayout.
    y = jnp.dot(x, w_ref[...], preferred_element_type=jnp.float32)
    o_ref[...] = (y + b_ref[...]).astype(o_ref.dtype)


def classifier_homo(x, weight, bias, *, block_b=2048):
    """Forward pass of Classifier_homo: Linear(ReLU(x)).

    x:      (B, 512) float32
    weight: (num_classes, 512) float32   (PyTorch nn.Linear convention)
    bias:   (num_classes,) float32
    returns (B, num_classes) float32
    """
    B, F = x.shape
    num_classes = weight.shape[0]
    assert F == weight.shape[1]

    # --- Lane-dense output: pad num_classes up to the next multiple of 128. --
    n_pad = max(128, ((num_classes + 127) // 128) * 128)

    # --- Batch tile: multiple of 8 (sublane).  Aim for >= 4 grid steps so the
    # "parallel" axis spans both v7x TCs with >= 2 pipelined steps each, but
    # never exceed block_b (keeps the v7x 64 MiB VMEM budget comfortable). ----
    quarter = -(-B // 4)                       # cdiv(B, 4)
    tb = min(block_b, max(8, ((quarter + 7) // 8) * 8))
    grid = (-(-B // tb),)                      # cdiv(B, tb); ragged last block OK

    # --- One-time wrapper-side weight prep (tiny: <= n_pad*512*4 bytes). ------
    w_p = (weight if n_pad == num_classes
           else jnp.pad(weight, ((0, n_pad - num_classes), (0, 0))))
    w_t = w_p.T                                # (F, n_pad): K on sublanes, N on lanes
    b_p = (bias if n_pad == num_classes
           else jnp.pad(bias, (0, n_pad - num_classes)))
    bias2d = b_p.reshape(1, n_pad)

    # --- Honest scheduling hint (true B, no padded rows). ---------------------
    cost = pl.CostEstimate(
        flops=2 * B * F * n_pad,
        transcendentals=0,
        bytes_accessed=(B * F * 4) + (F * n_pad * 4) + (B * n_pad * 4),
    )

    # --- Scoped VMEM budget from the actual footprint (+ headroom). -----------
    #   x (2x buffered) + out (2x buffered) + weight (2x) + bias + ReLU temp + y temp
    vmem_bytes = 4 * (2 * tb * F + 2 * tb * n_pad + 2 * F * n_pad + 2 * n_pad
                      + tb * F + tb * n_pad)
    vmem_limit = min(max(vmem_bytes + (4 << 20), 16 << 20), 48 << 20)

    out = pl.pallas_call(
        _classifier_kernel,
        out_shape=jax.ShapeDtypeStruct((B, n_pad), x.dtype),
        grid_spec=pl.GridSpec(
            grid=grid,
            in_specs=[
                # x: streamed per batch tile (double-buffered by the pipeline).
                pl.BlockSpec((tb, F), lambda i: (i, 0)),
                # transposed weight / bias: resident across all batch tiles.
                pl.BlockSpec((F, n_pad), lambda i: (0, 0)),
                pl.BlockSpec((1, n_pad), lambda i: (0, 0)),
            ],
            out_specs=pl.BlockSpec((tb, n_pad), lambda i: (i, 0)),
        ),
        compiler_params=pltpu.CompilerParams(
            # Batch tiles are independent -> shardable across TCs (v7x megacore).
            dimension_semantics=("parallel",),
            vmem_limit_bytes=vmem_limit,
        ),
        cost_estimate=cost,
    )(x, w_t, bias2d)

    # Drop the class-dim padding (caller can fuse this slice into the consumer).
    return out[:, :num_classes]


def _reference(x, weight, bias):
    return jnp.maximum(x, 0.0) @ weight.T + bias[None, :]


if __name__ == "__main__":
    num_classes = 10

    key = jax.random.PRNGKey(0)
    kx, kw, kb, kx2 = jax.random.split(key, 4)

    # Deterministic synthetic parameters (shapes from nn.Linear(512, num_classes)).
    bound = 1.0 / (IN_FEATURES ** 0.5)  # PyTorch default uniform init bound
    weight = jax.random.uniform(
        kw, (num_classes, IN_FEATURES), jnp.float32, -bound, bound
    )
    bias = jax.random.uniform(kb, (num_classes,), jnp.float32, -bound, bound)

    # Case 1: small aligned batch.
    batch = 8
    x = jax.random.normal(kx, (batch, IN_FEATURES), jnp.float32)
    out = jax.block_until_ready(classifier_homo(x, weight, bias))
    ref = _reference(x, weight, bias)
    assert out.shape == (batch, num_classes)
    assert jnp.allclose(out, ref, atol=1e-4, rtol=1e-4), "mismatch vs reference"

    # Case 2: ragged batch (exercises the masked last block, no padding copy).
    batch2 = 13
    x2 = jax.random.normal(kx2, (batch2, IN_FEATURES), jnp.float32)
    out2 = jax.block_until_ready(classifier_homo(x2, weight, bias))
    ref2 = _reference(x2, weight, bias)
    assert out2.shape == (batch2, num_classes)
    assert jnp.allclose(out2, ref2, atol=1e-4, rtol=1e-4), "mismatch vs reference (ragged)"

    print("KERNEL_OK")
</pallas_src>

<mosaic_0001>
module attributes {stable_mosaic.version = 11 : i64} {
  func.func @_classifier_kernel(%arg0: i32, %arg1: memref<8x512xf32, #tpu.memory_space<vmem>>, %arg2: memref<512x128xf32, #tpu.memory_space<vmem>>, %arg3: memref<1x128xf32, #tpu.memory_space<vmem>>, %arg4: memref<8x128xf32, #tpu.memory_space<vmem>>) attributes {dimension_semantics = [#tpu.dimension_semantics<parallel>], iteration_bounds = array<i64: 1>, scalar_prefetch = 0 : i64, scratch_operands = 0 : i64, tpu.core_type = #tpu.core_type<tc>, window_params = [{transform_indices = @transform_0, window_bounds = array<i64: 8, 512>}, {pipeline_mode = #tpu.pipeline_mode<synchronous>, transform_indices = @transform_1, window_bounds = array<i64: 512, 128>}, {pipeline_mode = #tpu.pipeline_mode<synchronous>, transform_indices = @transform_2, window_bounds = array<i64: 1, 128>}, {transform_indices = @transform_3, window_bounds = array<i64: 8, 128>}]} {
    %c0 = arith.constant 0 : index
    %c0_0 = arith.constant 0 : index
    %0 = vector.load %arg1[%c0, %c0_0] : memref<8x512xf32, #tpu.memory_space<vmem>>, vector<8x512xf32>
    %cst = arith.constant 0.000000e+00 : f32
    %1 = vector.broadcast %cst : f32 to vector<8x512xf32>
    %2 = arith.maximumf %0, %1 : vector<8x512xf32>
    %c0_1 = arith.constant 0 : index
    %c0_2 = arith.constant 0 : index
    %3 = vector.load %arg2[%c0_1, %c0_2] : memref<512x128xf32, #tpu.memory_space<vmem>>, vector<512x128xf32>
    %cst_3 = arith.constant dense<0.000000e+00> : vector<8x128xf32>
    %4 = tpu.matmul %2, %3, %cst_3 {dimension_numbers = #tpu.dot_dimension_numbers<[1], [0], [0], [1], [0, 0, 1, 1], [], []>} : vector<8x512xf32>, vector<512x128xf32>, vector<8x128xf32> -> vector<8x128xf32>
    %c0_4 = arith.constant 0 : index
    %c0_5 = arith.constant 0 : index
    %5 = vector.load %arg3[%c0_4, %c0_5] : memref<1x128xf32, #tpu.memory_space<vmem>>, vector<1x128xf32>
    %6 = vector.broadcast %5 : vector<1x128xf32> to vector<8x128xf32>
    %7 = arith.addf %4, %6 : vector<8x128xf32>
    %c0_6 = arith.constant 0 : index
    %c0_7 = arith.constant 0 : index
    %8 = vector.load %arg4[%c0_6, %c0_7] : memref<8x128xf32, #tpu.memory_space<vmem>>, vector<8x128xf32>
    tpu.vector_store %arg4[%c0_6, %c0_7], %7 {strides = array<i32>} : memref<8x128xf32, #tpu.memory_space<vmem>>, vector<8x128xf32>,
    return
  }
  func.func @transform_0(%arg0: i32) -> (i32, i32) {
    %c0_i32 = arith.constant 0 : i32
    %c0_i32_0 = arith.constant 0 : i32
    return %arg0, %c0_i32 : i32, i32
  }
  func.func @transform_1(%arg0: i32) -> (i32, i32) {
    %c0_i32 = arith.constant 0 : i32
    %c0_i32_0 = arith.constant 0 : i32
    %c0_i32_1 = arith.constant 0 : i32
    return %c0_i32, %c0_i32_0 : i32, i32
  }
  func.func @transform_2(%arg0: i32) -> (i32, i32) {
    %c0_i32 = arith.constant 0 : i32
    %c0_i32_0 = arith.constant 0 : i32
    %c0_i32_1 = arith.constant 0 : i32
    return %c0_i32, %c0_i32_0 : i32, i32
  }
  func.func @transform_3(%arg0: i32) -> (i32, i32) {
    %c0_i32 = arith.constant 0 : i32
    %c0_i32_0 = arith.constant 0 : i32
    return %arg0, %c0_i32 : i32, i32
  }
}

</mosaic_0001>

<llo_original>
// kernel: tpu_custom_call.1
$region0: #{tpu_custom_call.1}
  #allocation0 [shape = 'u32[]', space=smem, size = 0x4, offset = 0x4, fixed_abs, tag = 'smem constant byte address 0x4 - core index']
  #allocation1 [shape = 'u32[144,128]{1,0:T(1,128)}', space=vmem, size = 0x12000, scoped, tag = 'internal scratch']
  %s0 = inlined_call_operand.hbm [shape: f32[8,512], index: 0, kind: input, shape index: {}]
  %s1 = inlined_call_operand.hbm [shape: f32[512,128], index: 1, kind: input, shape index: {}]
  %s2 = inlined_call_operand.vmem [shape: f32[1,128], index: 2, kind: input, shape index: {}]
  %s3 = inlined_call_operand.hbm [shape: f32[8,128], index: 3, kind: output, shape index: {}]
  %s4 = sld [smem:[#allocation0]]
  $region30: #{tpu_custom_call.1} parent=0
    _
  %s6 = ssub.s32 1, %s4
  %s7 = scalar_select 0, %s6, %s4
  $region1: #{tpu_custom_call.1} parent=0
    #allocation2 [shape = 'u8[16384]{0}', space=vmem, size = 0x4000, scoped, tag = 'input window, operand 0, single buffered']
    #allocation3 [shape = 's32[1]{0}', space=sflag, size = 0x4, scoped, tag = 'scoped memory for tpu_custom_call.1']
    #allocation4 [shape = 's32[1]{0}', space=sflag, size = 0x4, scoped, tag = 'scoped memory for tpu_custom_call.1']
    #allocation5 [shape = 'u8[262144]{0}', space=vmem, size = 0x40000, scoped, tag = 'input window, operand 1, single buffered']
    #allocation6 [shape = 's32[1]{0}', space=sflag, size = 0x4, scoped, tag = 'scoped memory for tpu_custom_call.1']
    #allocation7 [shape = 'u8[4096]{0}', space=vmem, size = 0x1000, scoped, tag = 'output window, operand 0, single buffered']
    %8 = vsyncpa [#allocation3], 0
    %9 = vsyncpa [#allocation6], 0
    %10 = vsyncpa [#allocation4], 0
    // Predicated region
    $region2: #{tpu_custom_call.1} parent=1 // pred_check
      _
    $region3: #{tpu_custom_call.1} parent=1 // pred_check_branch
      %12 = sbr.rel (0) target = $region5
    $region4: #{tpu_custom_call.1} parent=1 // pred_region
      %s14 = ssub.s32 512, 512
      %15 = vsyncadd [#allocation3], %s14
      %s17 = sshll.u32 [#allocation2], 4
      %s18 = int_to_ptr.vmem [resolvable:$true] %s17
      %20 = dma.hbm_to_vmem [thread:$0]  %s0, 512, %s18, [#allocation3]
    $region5: #{tpu_custom_call.1} parent=1 // pred_fallthru
      _
    // Predicated region
    $region6: #{tpu_custom_call.1} parent=1 // pred_check
      _
    $region7: #{tpu_custom_call.1} parent=1 // pred_check_branch
      %22 = sbr.rel (0) target = $region9
    $region8: #{tpu_custom_call.1} parent=1 // pred_region
      %s24 = ssub.s32 8192, 8192
      %25 = vsyncadd [#allocation6], %s24
      %s26 = sshll.u32 [#allocation5], 4
      %s27 = int_to_ptr.vmem [resolvable:$true] %s26
      %32 = dma.hbm_to_vmem [thread:$0]  %s1, 8192, %s27, [#allocation6], 128, 128, 8
    $region9: #{tpu_custom_call.1} parent=1 // pred_fallthru
      _
    // Predicated region
    $region10: #{tpu_custom_call.1} parent=1 // pred_check
      _
    $region11: #{tpu_custom_call.1} parent=1 // pred_check_branch
      %34 = sbr.rel (0) target = $region13
    $region12: #{tpu_custom_call.1} parent=1 // pred_region
      _
    $region13: #{tpu_custom_call.1} parent=1 // pred_fallthru
      _
    // Predicated region
    $region14: #{tpu_custom_call.1} parent=1 // pred_check
      _
    $region15: #{tpu_custom_call.1} parent=1 // pred_check_branch
      %36 = sbr.rel (0) target = $region17
    $region16: #{tpu_custom_call.1} parent=1 // pred_region
      %37 = dma.done [#allocation3], 512
    $region17: #{tpu_custom_call.1} parent=1 // pred_fallthru
      _
    // Predicated region
    $region18: #{tpu_custom_call.1} parent=1 // pred_check
      _
    $region19: #{tpu_custom_call.1} parent=1 // pred_check_branch
      %39 = sbr.rel (0) target = $region21
    $region20: #{tpu_custom_call.1} parent=1 // pred_region
      %40 = dma.done [#allocation6], 8192
    $region21: #{tpu_custom_call.1} parent=1 // pred_fallthru
      _
    %v41 = vld [vmem:[#allocation2] sm:$0xff]
    %v42 = vld [vmem:[#allocation2 + $0x8] sm:$0xff]
    %v43 = vld [vmem:[#allocation2 + $0x10] sm:$0xff]
    %v44 = vld [vmem:[#allocation2 + $0x18] sm:$0xff]
    %v45 = vmax.f32 %v41, 0.0
    %v46 = vmax.f32 %v42, 0.0
    %v47 = vmax.f32 %v43, 0.0
    %v48 = vmax.f32 %v44, 0.0
    %v49 = vld [vmem:[#allocation5] sm:$0xff]
    %v50 = vld [vmem:[#allocation5 + $0x8] sm:$0xff]
    %v51 = vld [vmem:[#allocation5 + $0x10] sm:$0xff]
    %v52 = vld [vmem:[#allocation5 + $0x18] sm:$0xff]
    %v53 = vld [vmem:[#allocation5 + $0x20] sm:$0xff]
    %v54 = vld [vmem:[#allocation5 + $0x28] sm:$0xff]
    %v55 = vld [vmem:[#allocation5 + $0x30] sm:$0xff]
    %v56 = vld [vmem:[#allocation5 + $0x38] sm:$0xff]
    %v57 = vld [vmem:[#allocation5 + $0x40] sm:$0xff]
    %v58 = vld [vmem:[#allocation5 + $0x48] sm:$0xff]
    %v59 = vld [vmem:[#allocation5 + $0x50] sm:$0xff]
    %v60 = vld [vmem:[#allocation5 + $0x58] sm:$0xff]
    %v61 = vld [vmem:[#allocation5 + $0x60] sm:$0xff]
    %v62 = vld [vmem:[#allocation5 + $0x68] sm:$0xff]
    %v63 = vld [vmem:[#allocation5 + $0x70] sm:$0xff]
    %v64 = vld [vmem:[#allocation5 + $0x78] sm:$0xff]
    %v65 = vld [vmem:[#allocation5 + $0x80] sm:$0xff]
    %v66 = vld [vmem:[#allocation5 + $0x88] sm:$0xff]
    %v67 = vld [vmem:[#allocation5 + $0x90] sm:$0xff]
    %v68 = vld [vmem:[#allocation5 + $0x98] sm:$0xff]
    %v69 = vld [vmem:[#allocation5 + $0xa0] sm:$0xff]
    %v70 = vld [vmem:[#allocation5 + $0xa8] sm:$0xff]
    %v71 = vld [vmem:[#allocation5 + $0xb0] sm:$0xff]
    %v72 = vld [vmem:[#allocation5 + $0xb8] sm:$0xff]
    %v73 = vld [vmem:[#allocation5 + $0xc0] sm:$0xff]
    %v74 = vld [vmem:[#allocation5 + $0xc8] sm:$0xff]
    %v75 = vld [vmem:[#allocation5 + $0xd0] sm:$0xff]
    %v76 = vld [vmem:[#allocation5 + $0xd8] sm:$0xff]
    %v77 = vld [vmem:[#allocation5 + $0xe0] sm:$0xff]
    %v78 = vld [vmem:[#allocation5 + $0xe8] sm:$0xff]
    %v79 = vld [vmem:[#allocation5 + $0xf0] sm:$0xff]
    %v80 = vld [vmem:[#allocation5 + $0xf8] sm:$0xff]
    %v81 = vld [vmem:[#allocation5 + $0x100] sm:$0xff]
    %v82 = vld [vmem:[#allocation5 + $0x108] sm:$0xff]
    %v83 = vld [vmem:[#allocation5 + $0x110] sm:$0xff]
    %v84 = vld [vmem:[#allocation5 + $0x118] sm:$0xff]
    %v85 = vld [vmem:[#allocation5 + $0x120] sm:$0xff]
    %v86 = vld [vmem:[#allocation5 + $0x128] sm:$0xff]
    %v87 = vld [vmem:[#allocation5 + $0x130] sm:$0xff]
    %v88 = vld [vmem:[#allocation5 + $0x138] sm:$0xff]
    %v89 = vld [vmem:[#allocation5 + $0x140] sm:$0xff]
    %v90 = vld [vmem:[#allocation5 + $0x148] sm:$0xff]
    %v91 = vld [vmem:[#allocation5 + $0x150] sm:$0xff]
    %v92 = vld [vmem:[#allocation5 + $0x158] sm:$0xff]
    %v93 = vld [vmem:[#allocation5 + $0x160] sm:$0xff]
    %v94 = vld [vmem:[#allocation5 + $0x168] sm:$0xff]
    %v95 = vld [vmem:[#allocation5 + $0x170] sm:$0xff]
    %v96 = vld [vmem:[#allocation5 + $0x178] sm:$0xff]
    %v97 = vld [vmem:[#allocation5 + $0x180] sm:$0xff]
    %v98 = vld [vmem:[#allocation5 + $0x188] sm:$0xff]
    %v99 = vld [vmem:[#allocation5 + $0x190] sm:$0xff]
    %v100 = vld [vmem:[#allocation5 + $0x198] sm:$0xff]
    %v101 = vld [vmem:[#allocation5 + $0x1a0] sm:$0xff]
    %v102 = vld [vmem:[#allocation5 + $0x1a8] sm:$0xff]
    %v103 = vld [vmem:[#allocation5 + $0x1b0] sm:$0xff]
    %v104 = vld [vmem:[#allocation5 + $0x1b8] sm:$0xff]
    %v105 = vld [vmem:[#allocation5 + $0x1c0] sm:$0xff]
    %v106 = vld [vmem:[#allocation5 + $0x1c8] sm:$0xff]
    %v107 = vld [vmem:[#allocation5 + $0x1d0] sm:$0xff]
    %v108 = vld [vmem:[#allocation5 + $0x1d8] sm:$0xff]
    %v109 = vld [vmem:[#allocation5 + $0x1e0] sm:$0xff]
    %v110 = vld [vmem:[#allocation5 + $0x1e8] sm:$0xff]
    %v111 = vld [vmem:[#allocation5 + $0x1f0] sm:$0xff]
    %v112 = vld [vmem:[#allocation5 + $0x1f8] sm:$0xff]
    %v113 = vld [vmem:[%s2] sm:$0x1]
    %v115 = vlaneseq
    %v116 = vshrl.u32 %v115, 7
    %v117 = vsub.s32 0, %v116
    %v118 = vrot.slane %v113, %v117
    %120 = vmatprep.subr.mxu0 0.0
    %121 = vmatpush1.msra.mxu0 %v64
    %122 = vmatprep.subr.mxu0 0.0
    %123 = vmatpush1.msra.mxu0 %v63
    %124 = vmatprep.subr.mxu0 0.0
    %125 = vmatpush1.msra.mxu0 %v62
    %126 = vmatprep.subr.mxu0 0.0
    %127 = vmatpush1.msra.mxu0 %v61
    %128 = vmatprep.subr.mxu0 0.0
    %129 = vmatpush1.msra.mxu0 %v60
    %130 = vmatprep.subr.mxu0 0.0
    %131 = vmatpush1.msra.mxu0 %v59
    %132 = vmatprep.subr.mxu0 0.0
    %133 = vmatpush1.msra.mxu0 %v58
    %134 = vmatprep.subr.mxu0 0.0
    %135 = vmatpush1.msra.mxu0 %v57
    %136 = vmatprep.subr.mxu0 0.0
    %137 = vmatpush1.msra.mxu0 %v56
    %138 = vmatprep.subr.mxu0 0.0
    %139 = vmatpush1.msra.mxu0 %v55
    %140 = vmatprep.subr.mxu0 0.0
    %141 = vmatpush1.msra.mxu0 %v54
    %142 = vmatprep.subr.mxu0 0.0
    %143 = vmatpush1.msra.mxu0 %v53
    %144 = vmatprep.subr.mxu0 0.0
    %145 = vmatpush1.msra.mxu0 %v52
    %146 = vmatprep.subr.mxu0 0.0
    %147 = vmatpush1.msra.mxu0 %v51
    %148 = vmatprep.subr.mxu0 0.0
    %149 = vmatpush1.msra.mxu0 %v50
    %150 = vmatprep.subr.mxu0 0.0
    %151 = vmatpush1.msra.mxu0 %v49
    %152 = vmatprep.subr.mxu0 0.0
    %153 = vmatpush2.msra.mxu0 %v80
    %154 = vmatprep.subr.mxu0 0.0
    %155 = vmatpush2.msra.mxu0 %v79
    %156 = vmatprep.subr.mxu0 0.0
    %157 = vmatpush2.msra.mxu0 %v78
    %158 = vmatprep.subr.mxu0 0.0
    %159 = vmatpush2.msra.mxu0 %v77
    %160 = vmatprep.subr.mxu0 0.0
    %161 = vmatpush2.msra.mxu0 %v76
    %162 = vmatprep.subr.mxu0 0.0
    %163 = vmatpush2.msra.mxu0 %v75
    %164 = vmatprep.subr.mxu0 0.0
    %165 = vmatpush2.msra.mxu0 %v74
    %166 = vmatprep.subr.mxu0 0.0
    %167 = vmatpush2.msra.mxu0 %v73
    %168 = vmatprep.subr.mxu0 0.0
    %169 = vmatpush2.msra.mxu0 %v72
    %170 = vmatprep.subr.mxu0 0.0
    %171 = vmatpush2.msra.mxu0 %v71
    %172 = vmatprep.subr.mxu0 0.0
    %173 = vmatpush2.msra.mxu0 %v70
    %174 = vmatprep.subr.mxu0 0.0
    %175 = vmatpush2.msra.mxu0 %v69
    %176 = vmatprep.subr.mxu0 0.0
    %177 = vmatpush2.msra.mxu0 %v68
    %178 = vmatprep.subr.mxu0 0.0
    %179 = vmatpush2.msra.mxu0 %v67
    %180 = vmatprep.subr.mxu0 0.0
    %181 = vmatpush2.msra.mxu0 %v66
    %182 = vmatprep.subr.mxu0 0.0
    %183 = vmatpush2.msra.mxu0 %v65
    %184 = vmatprep.mubr.f32.mxu0 %v46
    %185 = vmatmul.mubr.f32.gmra.mxu0 %v45
    %v186 = vpop.f32.mrf.mxu0
    %v187 = vadd.f32 %v118, %v186
    %v188 = vpop.f32.mrf.mxu0
    %189 = vdwg.mxu0
    %190 = vmatprep.subr.mxu0 0.0
    %191 = vmatpush1.msra.mxu0 %v96
    %192 = vmatprep.subr.mxu0 0.0
    %193 = vmatpush1.msra.mxu0 %v95
    %194 = vmatprep.subr.mxu0 0.0
    %195 = vmatpush1.msra.mxu0 %v94
    %196 = vmatprep.subr.mxu0 0.0
    %197 = vmatpush1.msra.mxu0 %v93
    %198 = vmatprep.subr.mxu0 0.0
    %199 = vmatpush1.msra.mxu0 %v92
    %200 = vmatprep.subr.mxu0 0.0
    %201 = vmatpush1.msra.mxu0 %v91
    %202 = vmatprep.subr.mxu0 0.0
    %203 = vmatpush1.msra.mxu0 %v90
    %204 = vmatprep.subr.mxu0 0.0
    %205 = vmatpush1.msra.mxu0 %v89
    %206 = vmatprep.subr.mxu0 0.0
    %207 = vmatpush1.msra.mxu0 %v88
    %208 = vmatprep.subr.mxu0 0.0
    %209 = vmatpush1.msra.mxu0 %v87
    %210 = vmatprep.subr.mxu0 0.0
    %211 = vmatpush1.msra.mxu0 %v86
    %212 = vmatprep.subr.mxu0 0.0
    %213 = vmatpush1.msra.mxu0 %v85
    %214 = vmatprep.subr.mxu0 0.0
    %215 = vmatpush1.msra.mxu0 %v84
    %216 = vmatprep.subr.mxu0 0.0
    %217 = vmatpush1.msra.mxu0 %v83
    %218 = vmatprep.subr.mxu0 0.0
    %219 = vmatpush1.msra.mxu0 %v82
    %220 = vmatprep.subr.mxu0 0.0
    %221 = vmatpush1.msra.mxu0 %v81
    %222 = vmatprep.subr.mxu0 0.0
    %223 = vmatpush2.msra.mxu0 %v112
    %224 = vmatprep.subr.mxu0 0.0
    %225 = vmatpush2.msra.mxu0 %v111
    %226 = vmatprep.subr.mxu0 0.0
    %227 = vmatpush2.msra.mxu0 %v110
    %228 = vmatprep.subr.mxu0 0.0
    %229 = vmatpush2.msra.mxu0 %v109
    %230 = vmatprep.subr.mxu0 0.0
    %231 = vmatpush2.msra.mxu0 %v108
    %232 = vmatprep.subr.mxu0 0.0
    %233 = vmatpush2.msra.mxu0 %v107
    %234 = vmatprep.subr.mxu0 0.0
    %235 = vmatpush2.msra.mxu0 %v106
    %236 = vmatprep.subr.mxu0 0.0
    %237 = vmatpush2.msra.mxu0 %v105
    %238 = vmatprep.subr.mxu0 0.0
    %239 = vmatpush2.msra.mxu0 %v104
    %240 = vmatprep.subr.mxu0 0.0
    %241 = vmatpush2.msra.mxu0 %v103
    %242 = vmatprep.subr.mxu0 0.0
    %243 = vmatpush2.msra.mxu0 %v102
    %244 = vmatprep.subr.mxu0 0.0
    %245 = vmatpush2.msra.mxu0 %v101
    %246 = vmatprep.subr.mxu0 0.0
    %247 = vmatpush2.msra.mxu0 %v100
    %248 = vmatprep.subr.mxu0 0.0
    %249 = vmatpush2.msra.mxu0 %v99
    %250 = vmatprep.subr.mxu0 0.0
    %251 = vmatpush2.msra.mxu0 %v98
    %252 = vmatprep.subr.mxu0 0.0
    %253 = vmatpush2.msra.mxu0 %v97
    %254 = vmatprep.mubr.f32.mxu0 %v48
    %255 = vmatmul.mubr.f32.gmra.mxu0 %v47
    %v256 = vpop.f32.mrf.mxu0
    %v257 = vadd.f32 %v187, %v256
    %v258 = vpop.f32.mrf.mxu0
    %259 = vdwg.mxu0
    %260 = vst [vmem:[#allocation7] sm:$0xff] %v257
    // Predicated region
    $region22: #{tpu_custom_call.1} parent=1 // pred_check
      _
    $region23: #{tpu_custom_call.1} parent=1 // pred_check_branch
      %262 = sbr.rel (0) target = $region25
    $region24: #{tpu_custom_call.1} parent=1 // pred_region
      %s264 = ssub.s32 128, 128
      %265 = vsyncadd [#allocation4], %s264
      %s267 = sshll.u32 [#allocation7], 4
      %s268 = int_to_ptr.vmem [resolvable:$true] %s267
      %270 = dma.vmem_to_hbm [thread:$0]  %s268, 128, %s3, [#allocation4]
    $region25: #{tpu_custom_call.1} parent=1 // pred_fallthru
      _
    // Predicated region
    $region26: #{tpu_custom_call.1} parent=1 // pred_check
      _
    $region27: #{tpu_custom_call.1} parent=1 // pred_check_branch
      %272 = sbr.rel (0) target = $region29
    $region28: #{tpu_custom_call.1} parent=1 // pred_region
      %273 = dma.done [#allocation4], 128
    $region29: #{tpu_custom_call.1} parent=1 // pred_fallthru
      _
    %274 = vsyncpa [#allocation3], 1
    %275 = vsyncpa [#allocation6], 1
    %276 = vsyncpa [#allocation4], 1

</llo_original>
